<compile_context>
chip_gen: v5e
topology: v5e:2x2
jax: 0.10.0
libtpu: 0.0.40
codegen_flags: <defaults>
</compile_context>

<pallas_src>
import functools

import jax
import jax.numpy as jnp
from jax.experimental import pallas as pl
from jax.experimental.pallas import tpu as pltpu


def _round_up(x, m):
    return ((x + m - 1) // m) * m


def _cem_kernel(x_ref, wp_ref, wn_ref, bp_ref, bn_ref, c_ref, o_ref,
                accp_ref, accn_ref, *, negative_slope):
    k = pl.program_id(2)

    @pl.when(k == 0)
    def _():
        accp_ref[...] = jnp.zeros_like(accp_ref)
        accn_ref[...] = jnp.zeros_like(accn_ref)

    x = x_ref[...]
    accp_ref[...] += jnp.dot(x, wp_ref[...], preferred_element_type=jnp.float32)
    accn_ref[...] += jnp.dot(x, wn_ref[...], preferred_element_type=jnp.float32)

    @pl.when(k == pl.num_programs(2) - 1)
    def _():
        pos = accp_ref[...] + bp_ref[...]
        neg = accn_ref[...] + bn_ref[...]
        # LeakyReLU for 0 <= negative_slope <= 1 (asserted in the wrapper):
        pos = jnp.maximum(pos, negative_slope * pos)
        neg = jnp.maximum(neg, negative_slope * neg)
        c = c_ref[...]
        # pos*c + neg*(1-c)  ==  neg + (pos - neg)*c   (one fewer mul / no 1-c)
        o_ref[...] = (neg + (pos - neg) * c).astype(o_ref.dtype)


def make_modified_cem(w, b, *, n_concepts, emb_size, negative_slope=0.01,
                      compute_dtype=jnp.float32, out_dtype=jnp.float32,
                      tm=512, tn=512, tk=1024):
    """Build a forward(x, c_pred) -> (B, n_concepts, emb_size) callable.

    w: (in_features, 2*emb*n_concepts)  -- pre-transposed nn.Linear weight (W.T)
    b: (2*emb*n_concepts,)
    Weight split / pad / cast happens ONCE here (parameter-prep time).
    """
    assert 0.0 <= negative_slope <= 1.0, (
        "max(y, slope*y) LeakyReLU trick requires 0 <= slope <= 1")
    K = w.shape[0]
    CE = n_concepts * emb_size
    assert w.shape == (K, 2 * CE) and b.shape == (2 * CE,)

    tn = min(tn, _round_up(CE, 128))
    tk = min(tk, _round_up(K, 128))
    Np, Kp = _round_up(CE, tn), _round_up(K, tk)

    def pad2(a, rows, cols):
        return jnp.pad(a, ((0, rows - a.shape[0]), (0, cols - a.shape[1])))

    # One-time weight prep.  In the row-major view, concept c's positive
    # embedding lives in columns [c*E, (c+1)*E) and the negative one CE later.
    w_pos = jax.device_put(pad2(w[:, :CE].astype(compute_dtype), Kp, Np))
    w_neg = jax.device_put(pad2(w[:, CE:].astype(compute_dtype), Kp, Np))
    b_pos = jax.device_put(pad2(b[:CE].reshape(1, CE).astype(jnp.float32), 1, Np))
    b_neg = jax.device_put(pad2(b[CE:].reshape(1, CE).astype(jnp.float32), 1, Np))

    kernel = functools.partial(_cem_kernel, negative_slope=negative_slope)

    def forward(x, c_pred):
        B = x.shape[0]
        assert x.shape == (B, K) and c_pred.shape == (B, n_concepts)

        tm_eff = min(tm, _round_up(B, 8))
        Mp = _round_up(B, tm_eff)

        # v7x megacore: if there's a single M block, try to expose >=2 blocks
        # along the N "parallel" axis so both TensorCores get work.
        tn_eff = tn
        if Mp // tm_eff == 1 and Np // tn_eff == 1 and tn_eff >= 256:
            tn_eff //= 2

        xp = pad2(x.astype(compute_dtype), Mp, Kp)
        # TODO(synk): for large B (B >~ K/4), expand c_pred inside the kernel
        # epilogue instead of streaming a pre-expanded (B, CE) array from HBM.
        c_rep = jnp.repeat(c_pred.astype(jnp.float32), emb_size, axis=1)
        crp = pad2(c_rep, Mp, Np)

        grid = (Mp // tm_eff, Np // tn_eff, Kp // tk)

        # Explicit scoped-VMEM budget (double-buffered inputs/outputs + accs),
        # so tm=512/tk=1024 also compiles on v5e's 16 MiB default.
        cb = jnp.dtype(compute_dtype).itemsize
        ob = jnp.dtype(out_dtype).itemsize
        vmem_bytes = (2 * (tm_eff * tk * cb              # x
                           + 2 * tk * tn_eff * cb        # W_pos + W_neg
                           + 2 * tn_eff * 4              # biases
                           + tm_eff * tn_eff * 4         # c_rep
                           + tm_eff * tn_eff * ob)       # output
                      + 2 * tm_eff * tn_eff * 4)         # f32 accumulators
        vmem_limit = max(32 * 1024 * 1024, int(1.3 * vmem_bytes))

        nbytes = lambda a: a.size * a.dtype.itemsize
        cost = pl.CostEstimate(
            flops=4 * Mp * Np * Kp + 5 * Mp * Np,
            transcendentals=0,
            bytes_accessed=(nbytes(xp) + nbytes(w_pos) + nbytes(w_neg)
                            + nbytes(b_pos) + nbytes(b_neg) + nbytes(crp)
                            + Mp * Np * ob),
        )

        out = pl.pallas_call(
            kernel,
            out_shape=jax.ShapeDtypeStruct((Mp, Np), out_dtype),
            grid_spec=pltpu.PrefetchScalarGridSpec(
                num_scalar_prefetch=0,
                grid=grid,
                in_specs=[
                    pl.BlockSpec((tm_eff, tk), lambda i, j, k: (i, k)),    # x
                    pl.BlockSpec((tk, tn_eff), lambda i, j, k: (k, j)),    # W_pos
                    pl.BlockSpec((tk, tn_eff), lambda i, j, k: (k, j)),    # W_neg
                    pl.BlockSpec((1, tn_eff), lambda i, j, k: (0, j)),     # b_pos
                    pl.BlockSpec((1, tn_eff), lambda i, j, k: (0, j)),     # b_neg
                    pl.BlockSpec((tm_eff, tn_eff), lambda i, j, k: (i, j)),  # c
                ],
                out_specs=pl.BlockSpec((tm_eff, tn_eff), lambda i, j, k: (i, j)),
                scratch_shapes=[pltpu.VMEM((tm_eff, tn_eff), jnp.float32),
                                pltpu.VMEM((tm_eff, tn_eff), jnp.float32)],
            ),
            compiler_params=pltpu.CompilerParams(
                dimension_semantics=("parallel", "parallel", "arbitrary"),
                vmem_limit_bytes=vmem_limit),
            cost_estimate=cost,
        )(xp, w_pos, w_neg, b_pos, b_neg, crp)

        return out[:B, :CE].reshape(B, n_concepts, emb_size)

    return jax.jit(forward)


def _reference(x, c_pred, w, b, *, n_concepts, emb_size, negative_slope=0.01):
    y = x @ w + b
    y = jnp.where(y >= 0, y, negative_slope * y)
    ce = y.reshape(x.shape[0], 2 * n_concepts, emb_size)
    pos, neg = ce[:, :n_concepts, :], ce[:, n_concepts:, :]
    cp = c_pred[:, :, None]
    return pos * cp + neg * (1.0 - cp)


def _make_inputs(key, B, in_features, n_concepts, emb_size):
    out_features = 2 * emb_size * n_concepts
    kx, kc, kw, kb = jax.random.split(key, 4)
    x = jax.random.normal(kx, (B, in_features), dtype=jnp.float32)
    c_pred = jax.random.uniform(kc, (B, n_concepts), dtype=jnp.float32)
    bound = 1.0 / (in_features ** 0.5)
    w = jax.random.uniform(kw, (in_features, out_features), dtype=jnp.float32,
                           minval=-bound, maxval=bound)
    b = jax.random.uniform(kb, (out_features,), dtype=jnp.float32,
                           minval=-bound, maxval=bound)
    return x, c_pred, w, b


if __name__ == "__main__":
    key = jax.random.PRNGKey(0)
    k1, k2 = jax.random.split(key)

    # --- Test 1: aligned small shapes, f32 compute, strict tolerance ---
    B, in_features, n_concepts, emb_size = 8, 32, 4, 16
    x, c_pred, w, b = _make_inputs(k1, B, in_features, n_concepts, emb_size)
    fwd_f32 = make_modified_cem(w, b, n_concepts=n_concepts, emb_size=emb_size,
                                compute_dtype=jnp.float32)
    out = jax.block_until_ready(fwd_f32(x, c_pred))
    ref = _reference(x, c_pred, w, b, n_concepts=n_concepts, emb_size=emb_size)
    assert out.shape == (B, n_concepts, emb_size)
    assert jnp.allclose(out, ref, atol=1e-5, rtol=1e-5)

    # --- Test 2: ragged shapes (exercise padding), f32, strict tolerance ---
    B2, in2, nc2, e2 = 5, 20, 3, 10
    x2, c2, w2, b2 = _make_inputs(k2, B2, in2, nc2, e2)
    fwd_ragged = make_modified_cem(w2, b2, n_concepts=nc2, emb_size=e2,
                                   compute_dtype=jnp.float32)
    out2 = jax.block_until_ready(fwd_ragged(x2, c2))
    ref2 = _reference(x2, c2, w2, b2, n_concepts=nc2, emb_size=e2)
    assert out2.shape == (B2, nc2, e2)
    assert jnp.allclose(out2, ref2, atol=1e-5, rtol=1e-5)

    # --- Test 3: bf16 x/W (f32 accumulation + f32 epilogue), loose tolerance
    #     (bf16 inputs are a win on every generation, v5e included) ---
    fwd_bf16 = make_modified_cem(w, b, n_concepts=n_concepts, emb_size=emb_size,
                                 compute_dtype=jnp.bfloat16)
    out3 = jax.block_until_ready(fwd_bf16(x, c_pred))
    assert jnp.allclose(out3, ref, atol=5e-2, rtol=5e-2)

    print("KERNEL_OK")
</pallas_src>

<mosaic_0001>
module attributes {stable_mosaic.version = 11 : i64} {
  func.func @_cem_kernel(%arg0: i32, %arg1: i32, %arg2: i32, %arg3: memref<8x128xf32, #tpu.memory_space<vmem>>, %arg4: memref<128x128xf32, #tpu.memory_space<vmem>>, %arg5: memref<128x128xf32, #tpu.memory_space<vmem>>, %arg6: memref<1x128xf32, #tpu.memory_space<vmem>>, %arg7: memref<1x128xf32, #tpu.memory_space<vmem>>, %arg8: memref<8x128xf32, #tpu.memory_space<vmem>>, %arg9: memref<8x128xf32, #tpu.memory_space<vmem>>, %arg10: memref<8x128xf32, #tpu.memory_space<vmem>>, %arg11: memref<8x128xf32, #tpu.memory_space<vmem>>) attributes {dimension_semantics = [#tpu.dimension_semantics<parallel>, #tpu.dimension_semantics<parallel>, #tpu.dimension_semantics<arbitrary>], iteration_bounds = array<i64: 1, 1, 1>, scalar_prefetch = 0 : i64, scratch_operands = 2 : i64, tpu.core_type = #tpu.core_type<tc>, window_params = [{transform_indices = @transform_0, window_bounds = array<i64: 8, 128>}, {transform_indices = @transform_1, window_bounds = array<i64: 128, 128>}, {transform_indices = @transform_2, window_bounds = array<i64: 128, 128>}, {transform_indices = @transform_3, window_bounds = array<i64: 1, 128>}, {transform_indices = @transform_4, window_bounds = array<i64: 1, 128>}, {transform_indices = @transform_5, window_bounds = array<i64: 8, 128>}, {transform_indices = @transform_6, window_bounds = array<i64: 8, 128>}]} {
    %c0_i32 = arith.constant 0 : i32
    %0 = arith.cmpi eq, %arg2, %c0_i32 : i32
    %1 = arith.extui %0 : i1 to i32
    %c0_i32_0 = arith.constant 0 : i32
    %2 = arith.cmpi ne, %1, %c0_i32_0 : i32
    scf.if %2 {
      %cst_17 = arith.constant 0.000000e+00 : f32
      %17 = vector.broadcast %cst_17 : f32 to vector<8x128xf32>
      %c0_18 = arith.constant 0 : index
      %c0_19 = arith.constant 0 : index
      %18 = vector.load %arg10[%c0_18, %c0_19] : memref<8x128xf32, #tpu.memory_space<vmem>>, vector<8x128xf32>
      tpu.vector_store %arg10[%c0_18, %c0_19], %17 {strides = array<i32>} : memref<8x128xf32, #tpu.memory_space<vmem>>, vector<8x128xf32>,
      %cst_20 = arith.constant 0.000000e+00 : f32
      %19 = vector.broadcast %cst_20 : f32 to vector<8x128xf32>
      %c0_21 = arith.constant 0 : index
      %c0_22 = arith.constant 0 : index
      %20 = vector.load %arg11[%c0_21, %c0_22] : memref<8x128xf32, #tpu.memory_space<vmem>>, vector<8x128xf32>
      tpu.vector_store %arg11[%c0_21, %c0_22], %19 {strides = array<i32>} : memref<8x128xf32, #tpu.memory_space<vmem>>, vector<8x128xf32>,
    } else {
    }
    %c0 = arith.constant 0 : index
    %c0_1 = arith.constant 0 : index
    %3 = vector.load %arg3[%c0, %c0_1] : memref<8x128xf32, #tpu.memory_space<vmem>>, vector<8x128xf32>
    %c0_2 = arith.constant 0 : index
    %c0_3 = arith.constant 0 : index
    %4 = vector.load %arg10[%c0_2, %c0_3] : memref<8x128xf32, #tpu.memory_space<vmem>>, vector<8x128xf32>
    %c0_4 = arith.constant 0 : index
    %c0_5 = arith.constant 0 : index
    %5 = vector.load %arg4[%c0_4, %c0_5] : memref<128x128xf32, #tpu.memory_space<vmem>>, vector<128x128xf32>
    %cst = arith.constant dense<0.000000e+00> : vector<8x128xf32>
    %6 = tpu.matmul %3, %5, %cst {dimension_numbers = #tpu.dot_dimension_numbers<[1], [0], [0], [1], [0, 0, 1, 1], [], []>} : vector<8x128xf32>, vector<128x128xf32>, vector<8x128xf32> -> vector<8x128xf32>
    %7 = arith.addf %4, %6 : vector<8x128xf32>
    %c0_6 = arith.constant 0 : index
    %c0_7 = arith.constant 0 : index
    %8 = vector.load %arg10[%c0_6, %c0_7] : memref<8x128xf32, #tpu.memory_space<vmem>>, vector<8x128xf32>
    tpu.vector_store %arg10[%c0_6, %c0_7], %7 {strides = array<i32>} : memref<8x128xf32, #tpu.memory_space<vmem>>, vector<8x128xf32>,
    %c0_8 = arith.constant 0 : index
    %c0_9 = arith.constant 0 : index
    %9 = vector.load %arg11[%c0_8, %c0_9] : memref<8x128xf32, #tpu.memory_space<vmem>>, vector<8x128xf32>
    %c0_10 = arith.constant 0 : index
    %c0_11 = arith.constant 0 : index
    %10 = vector.load %arg5[%c0_10, %c0_11] : memref<128x128xf32, #tpu.memory_space<vmem>>, vector<128x128xf32>
    %cst_12 = arith.constant dense<0.000000e+00> : vector<8x128xf32>
    %11 = tpu.matmul %3, %10, %cst_12 {dimension_numbers = #tpu.dot_dimension_numbers<[1], [0], [0], [1], [0, 0, 1, 1], [], []>} : vector<8x128xf32>, vector<128x128xf32>, vector<8x128xf32> -> vector<8x128xf32>
    %12 = arith.addf %9, %11 : vector<8x128xf32>
    %c0_13 = arith.constant 0 : index
    %c0_14 = arith.constant 0 : index
    %13 = vector.load %arg11[%c0_13, %c0_14] : memref<8x128xf32, #tpu.memory_space<vmem>>, vector<8x128xf32>
    tpu.vector_store %arg11[%c0_13, %c0_14], %12 {strides = array<i32>} : memref<8x128xf32, #tpu.memory_space<vmem>>, vector<8x128xf32>,
    %c0_i32_15 = arith.constant 0 : i32
    %14 = arith.cmpi eq, %arg2, %c0_i32_15 : i32
    %15 = arith.extui %14 : i1 to i32
    %c0_i32_16 = arith.constant 0 : i32
    %16 = arith.cmpi ne, %15, %c0_i32_16 : i32
    scf.if %16 {
      %c0_17 = arith.constant 0 : index
      %c0_18 = arith.constant 0 : index
      %17 = vector.load %arg10[%c0_17, %c0_18] : memref<8x128xf32, #tpu.memory_space<vmem>>, vector<8x128xf32>
      %c0_19 = arith.constant 0 : index
      %c0_20 = arith.constant 0 : index
      %18 = vector.load %arg6[%c0_19, %c0_20] : memref<1x128xf32, #tpu.memory_space<vmem>>, vector<1x128xf32>
      %19 = vector.broadcast %18 : vector<1x128xf32> to vector<8x128xf32>
      %20 = arith.addf %17, %19 : vector<8x128xf32>
      %c0_21 = arith.constant 0 : index
      %c0_22 = arith.constant 0 : index
      %21 = vector.load %arg11[%c0_21, %c0_22] : memref<8x128xf32, #tpu.memory_space<vmem>>, vector<8x128xf32>
      %c0_23 = arith.constant 0 : index
      %c0_24 = arith.constant 0 : index
      %22 = vector.load %arg7[%c0_23, %c0_24] : memref<1x128xf32, #tpu.memory_space<vmem>>, vector<1x128xf32>
      %23 = vector.broadcast %22 : vector<1x128xf32> to vector<8x128xf32>
      %24 = arith.addf %21, %23 : vector<8x128xf32>
      %cst_25 = arith.constant 0.00999999977 : f32
      %25 = vector.broadcast %cst_25 : f32 to vector<8x128xf32>
      %26 = arith.mulf %25, %20 : vector<8x128xf32>
      %27 = arith.maximumf %20, %26 : vector<8x128xf32>
      %cst_26 = arith.constant 0.00999999977 : f32
      %28 = vector.broadcast %cst_26 : f32 to vector<8x128xf32>
      %29 = arith.mulf %28, %24 : vector<8x128xf32>
      %30 = arith.maximumf %24, %29 : vector<8x128xf32>
      %c0_27 = arith.constant 0 : index
      %c0_28 = arith.constant 0 : index
      %31 = vector.load %arg8[%c0_27, %c0_28] : memref<8x128xf32, #tpu.memory_space<vmem>>, vector<8x128xf32>
      %32 = arith.subf %27, %30 : vector<8x128xf32>
      %33 = arith.mulf %32, %31 : vector<8x128xf32>
      %34 = arith.addf %30, %33 : vector<8x128xf32>
      %c0_29 = arith.constant 0 : index
      %c0_30 = arith.constant 0 : index
      %35 = vector.load %arg9[%c0_29, %c0_30] : memref<8x128xf32, #tpu.memory_space<vmem>>, vector<8x128xf32>
      tpu.vector_store %arg9[%c0_29, %c0_30], %34 {strides = array<i32>} : memref<8x128xf32, #tpu.memory_space<vmem>>, vector<8x128xf32>,
    } else {
    }
    return
  }
  func.func @transform_0(%arg0: i32, %arg1: i32, %arg2: i32) -> (i32, i32) {
    %c0_i32 = arith.constant 0 : i32
    return %arg0, %arg2 : i32, i32
  }
  func.func @transform_1(%arg0: i32, %arg1: i32, %arg2: i32) -> (i32, i32) {
    %c0_i32 = arith.constant 0 : i32
    return %arg2, %arg1 : i32, i32
  }
  func.func @transform_2(%arg0: i32, %arg1: i32, %arg2: i32) -> (i32, i32) {
    %c0_i32 = arith.constant 0 : i32
    return %arg2, %arg1 : i32, i32
  }
  func.func @transform_3(%arg0: i32, %arg1: i32, %arg2: i32) -> (i32, i32) {
    %c0_i32 = arith.constant 0 : i32
    %c0_i32_0 = arith.constant 0 : i32
    return %c0_i32, %arg1 : i32, i32
  }
  func.func @transform_4(%arg0: i32, %arg1: i32, %arg2: i32) -> (i32, i32) {
    %c0_i32 = arith.constant 0 : i32
    %c0_i32_0 = arith.constant 0 : i32
    return %c0_i32, %arg1 : i32, i32
  }
  func.func @transform_5(%arg0: i32, %arg1: i32, %arg2: i32) -> (i32, i32) {
    %c0_i32 = arith.constant 0 : i32
    return %arg0, %arg1 : i32, i32
  }
  func.func @transform_6(%arg0: i32, %arg1: i32, %arg2: i32) -> (i32, i32) {
    %c0_i32 = arith.constant 0 : i32
    return %arg0, %arg1 : i32, i32
  }
}

</mosaic_0001>

<llo_original>
// kernel: forward.1
$region0: #{forward.1}
  #allocation0 [shape = 'u32[]', space=smem, size = 0x4, offset = 0x4, fixed_abs, tag = 'smem constant byte address 0x4 - core index']
  #allocation1 [shape = 'u32[72,128]{1,0:T(1,128)}', space=vmem, size = 0x9000, scoped, tag = 'internal scratch']
  #allocation2 [shape = 'f32[8,128]{1,0:T(8,128)}', space=vmem, size = 0x1000, scoped, tag = 'scratch operand']
  #allocation3 [shape = 'f32[8,128]{1,0:T(8,128)}', space=vmem, size = 0x1000, scoped, tag = 'scratch operand']
  %s0 = inlined_call_operand.vmem [shape: f32[8,128], index: 0, kind: input, shape index: {}]
  %s1 = inlined_call_operand.vmem [shape: f32[128,128], index: 1, kind: input, shape index: {}]
  %s2 = inlined_call_operand.hbm [shape: f32[128,128], index: 2, kind: input, shape index: {}]
  %s3 = inlined_call_operand.vmem [shape: f32[1,128], index: 3, kind: input, shape index: {}]
  %s4 = inlined_call_operand.vmem [shape: f32[1,128], index: 4, kind: input, shape index: {}]
  %s5 = inlined_call_operand.vmem [shape: f32[8,128], index: 5, kind: input, shape index: {}]
  %s6 = inlined_call_operand.vmem [shape: f32[8,128], index: 6, kind: output, shape index: {}]
  %s7 = sld [smem:[#allocation0]]
  $region46: #{forward.1} parent=0
    _
  %s9 = ssub.s32 1, %s7
  %s10 = scalar_select 0, %s9, %s7
  $region1: #{forward.1} parent=0
    #allocation4 [shape = 'u8[65536]{0}', space=vmem, size = 0x10000, scoped, tag = 'input window, operand 2, single buffered']
    #allocation5 [shape = 's32[1]{0}', space=sflag, size = 0x4, scoped, tag = 'scoped memory for forward.1']
    %11 = vsyncpa [#allocation5], 0
    // Predicated region
    $region2: #{forward.1} parent=1 // pred_check
      _
    $region3: #{forward.1} parent=1 // pred_check_branch
      %13 = sbr.rel (0) target = $region5
    $region4: #{forward.1} parent=1 // pred_region
      _
    $region5: #{forward.1} parent=1 // pred_fallthru
      _
    // Predicated region
    $region6: #{forward.1} parent=1 // pred_check
      _
    $region7: #{forward.1} parent=1 // pred_check_branch
      %15 = sbr.rel (0) target = $region9
    $region8: #{forward.1} parent=1 // pred_region
      _
    $region9: #{forward.1} parent=1 // pred_fallthru
      _
    // Predicated region
    $region10: #{forward.1} parent=1 // pred_check
      _
    $region11: #{forward.1} parent=1 // pred_check_branch
      %17 = sbr.rel (0) target = $region13
    $region12: #{forward.1} parent=1 // pred_region
      %19 = vsyncadd [#allocation5], 0
      %s20 = sshll.u32 %s2, 4
      %s21 = int_to_ptr.hbm [resolvable:$true] %s20
      %s22 = sshll.u32 [#allocation4], 4
      %s23 = int_to_ptr.vmem [resolvable:$true] %s22
      %28 = dma.hbm_to_vmem [thread:$0]  %s21, 2048, %s23, [#allocation5], 128, 128, 8
    $region13: #{forward.1} parent=1 // pred_fallthru
      _
    // Predicated region
    $region14: #{forward.1} parent=1 // pred_check
      _
    $region15: #{forward.1} parent=1 // pred_check_branch
      %30 = sbr.rel (0) target = $region17
    $region16: #{forward.1} parent=1 // pred_region
      _
    $region17: #{forward.1} parent=1 // pred_fallthru
      _
    // Predicated region
    $region18: #{forward.1} parent=1 // pred_check
      _
    $region19: #{forward.1} parent=1 // pred_check_branch
      %32 = sbr.rel (0) target = $region21
    $region20: #{forward.1} parent=1 // pred_region
      _
    $region21: #{forward.1} parent=1 // pred_fallthru
      _
    // Predicated region
    $region22: #{forward.1} parent=1 // pred_check
      _
    $region23: #{forward.1} parent=1 // pred_check_branch
      %34 = sbr.rel (0) target = $region25
    $region24: #{forward.1} parent=1 // pred_region
      _
    $region25: #{forward.1} parent=1 // pred_fallthru
      _
    // Predicated region
    $region26: #{forward.1} parent=1 // pred_check
      _
    $region27: #{forward.1} parent=1 // pred_check_branch
      %36 = sbr.rel (0) target = $region29
    $region28: #{forward.1} parent=1 // pred_region
      %38 = dma.done [#allocation5], 2048
    $region29: #{forward.1} parent=1 // pred_fallthru
      _
    %p39 = scmp.eq.s32.totalorder 0, 0
    // Predicated region
    $region30: #{forward.1} parent=1 // pred_check
      %p40 = pneg %p39
    $region31: #{forward.1} parent=1 // pred_check_branch
      %42 = sbr.rel (%p40) target = $region33
    $region32: #{forward.1} parent=1 // pred_region
      %43 = vst [vmem:[#allocation2] sm:$0xff] 0.0
      %44 = vst [vmem:[#allocation3] sm:$0xff] 0.0
    $region33: #{forward.1} parent=1 // pred_fallthru
      _
    %v45 = vld [vmem:[%s0] sm:$0xff]
    %v46 = vld [vmem:[#allocation2] sm:$0xff]
    %v47 = vld [vmem:[%s1] sm:$0xff]
    %v48 = vld [vmem:[%s1 + $0x8] sm:$0xff]
    %v49 = vld [vmem:[%s1 + $0x10] sm:$0xff]
    %v50 = vld [vmem:[%s1 + $0x18] sm:$0xff]
    %v51 = vld [vmem:[%s1 + $0x20] sm:$0xff]
    %v52 = vld [vmem:[%s1 + $0x28] sm:$0xff]
    %v53 = vld [vmem:[%s1 + $0x30] sm:$0xff]
    %v54 = vld [vmem:[%s1 + $0x38] sm:$0xff]
    %v55 = vld [vmem:[%s1 + $0x40] sm:$0xff]
    %v56 = vld [vmem:[%s1 + $0x48] sm:$0xff]
    %v57 = vld [vmem:[%s1 + $0x50] sm:$0xff]
    %v58 = vld [vmem:[%s1 + $0x58] sm:$0xff]
    %v59 = vld [vmem:[%s1 + $0x60] sm:$0xff]
    %v60 = vld [vmem:[%s1 + $0x68] sm:$0xff]
    %v61 = vld [vmem:[%s1 + $0x70] sm:$0xff]
    %v62 = vld [vmem:[%s1 + $0x78] sm:$0xff]
    %63 = vmatpush.msra.mxu0 %v62
    %64 = vmatpush.msra.mxu0 %v61
    %65 = vmatpush.msra.mxu0 %v60
    %66 = vmatpush.msra.mxu0 %v59
    %67 = vmatpush.msra.mxu0 %v58
    %68 = vmatpush.msra.mxu0 %v57
    %69 = vmatpush.msra.mxu0 %v56
    %70 = vmatpush.msra.mxu0 %v55
    %71 = vmatpush.msra.mxu0 %v54
    %72 = vmatpush.msra.mxu0 %v53
    %73 = vmatpush.msra.mxu0 %v52
    %74 = vmatpush.msra.mxu0 %v51
    %75 = vmatpush.msra.mxu0 %v50
    %76 = vmatpush.msra.mxu0 %v49
    %77 = vmatpush.msra.mxu0 %v48
    %78 = vmatpush.msra.mxu0 %v47
    %79 = vmatmul.f32.gmra.mxu0 %v45
    %v80 = vpop.f32.mrf.mxu0
    %v81 = vadd.f32 0.0, %v80
    %82 = vdwg.mxu0
    %v83 = vadd.f32 %v46, %v81
    %84 = vst [vmem:[#allocation2] sm:$0xff] %v83
    %v85 = vld [vmem:[#allocation3] sm:$0xff]
    %v86 = vld [vmem:[#allocation4] sm:$0xff]
    %v87 = vld [vmem:[#allocation4 + $0x8] sm:$0xff]
    %v88 = vld [vmem:[#allocation4 + $0x10] sm:$0xff]
    %v89 = vld [vmem:[#allocation4 + $0x18] sm:$0xff]
    %v90 = vld [vmem:[#allocation4 + $0x20] sm:$0xff]
    %v91 = vld [vmem:[#allocation4 + $0x28] sm:$0xff]
    %v92 = vld [vmem:[#allocation4 + $0x30] sm:$0xff]
    %v93 = vld [vmem:[#allocation4 + $0x38] sm:$0xff]
    %v94 = vld [vmem:[#allocation4 + $0x40] sm:$0xff]
    %v95 = vld [vmem:[#allocation4 + $0x48] sm:$0xff]
    %v96 = vld [vmem:[#allocation4 + $0x50] sm:$0xff]
    %v97 = vld [vmem:[#allocation4 + $0x58] sm:$0xff]
    %v98 = vld [vmem:[#allocation4 + $0x60] sm:$0xff]
    %v99 = vld [vmem:[#allocation4 + $0x68] sm:$0xff]
    %v100 = vld [vmem:[#allocation4 + $0x70] sm:$0xff]
    %v101 = vld [vmem:[#allocation4 + $0x78] sm:$0xff]
    %102 = vmatpush.msra.mxu0 %v101
    %103 = vmatpush.msra.mxu0 %v100
    %104 = vmatpush.msra.mxu0 %v99
    %105 = vmatpush.msra.mxu0 %v98
    %106 = vmatpush.msra.mxu0 %v97
    %107 = vmatpush.msra.mxu0 %v96
    %108 = vmatpush.msra.mxu0 %v95
    %109 = vmatpush.msra.mxu0 %v94
    %110 = vmatpush.msra.mxu0 %v93
    %111 = vmatpush.msra.mxu0 %v92
    %112 = vmatpush.msra.mxu0 %v91
    %113 = vmatpush.msra.mxu0 %v90
    %114 = vmatpush.msra.mxu0 %v89
    %115 = vmatpush.msra.mxu0 %v88
    %116 = vmatpush.msra.mxu0 %v87
    %117 = vmatpush.msra.mxu0 %v86
    %118 = vmatmul.f32.gmra.mxu0 %v45
    %v119 = vpop.f32.mrf.mxu0
    %v120 = vadd.f32 0.0, %v119
    %121 = vdwg.mxu0
    %v122 = vadd.f32 %v85, %v120
    %123 = vst [vmem:[#allocation3] sm:$0xff] %v122
    // Predicated region
    $region34: #{forward.1} parent=1 // pred_check
      %p124 = pneg %p39
    $region35: #{forward.1} parent=1 // pred_check_branch
      %126 = sbr.rel (%p124) target = $region37
    $region36: #{forward.1} parent=1 // pred_region
      %v127 = vld [vmem:[#allocation2] sm:$0xff]
      %v128 = vld [vmem:[%s3] sm:$0x1]
      %v130 = vperm.slane %v128, 0
      %v132 = vadd.f32 %v127, %v130
      %v133 = vld [vmem:[#allocation3] sm:$0xff]
      %v134 = vld [vmem:[%s4] sm:$0x1]
      %v136 = vperm.slane %v134, 0
      %v138 = vadd.f32 %v133, %v136
      %v139 = vmul.f32 %v132, 0.01
      %v140 = vmax.f32 %v132, %v139
      %v141 = vmul.f32 %v138, 0.01
      %v142 = vmax.f32 %v138, %v141
      %v143 = vld [vmem:[%s5] sm:$0xff]
      %v144 = vsub.f32 %v140, %v142
      %v145 = vmul.f32 %v144, %v143
      %v146 = vadd.f32 %v142, %v145
      %147 = vst [vmem:[%s6] sm:$0xff] %v146
    $region37: #{forward.1} parent=1 // pred_fallthru
      _
    // Predicated region
    $region38: #{forward.1} parent=1 // pred_check
      _
    $region39: #{forward.1} parent=1 // pred_check_branch
      %149 = sbr.rel (0) target = $region41
    $region40: #{forward.1} parent=1 // pred_region
      _
    $region41: #{forward.1} parent=1 // pred_fallthru
      _
    // Predicated region
    $region42: #{forward.1} parent=1 // pred_check
      _
    $region43: #{forward.1} parent=1 // pred_check_branch
      %151 = sbr.rel (0) target = $region45
    $region44: #{forward.1} parent=1 // pred_region
      _
    $region45: #{forward.1} parent=1 // pred_fallthru
      _
    %152 = vsyncpa [#allocation5], 1

</llo_original>
